<compile_context>
chip_gen: v6e
topology: v6e:2x2x1
jax: 0.10.0
libtpu: 0.0.40
codegen_flags: <defaults>
</compile_context>

<pallas_src>
import functools

import jax
import jax.numpy as jnp
from jax import lax
from jax.experimental import pallas as pl
from jax.experimental.pallas import tpu as pltpu

LN_EPS = 1e-5
_INV_SQRT2 = 0.7071067811865476
_SQRT_2_OVER_PI = 0.7978845608028654


def _round_up(a, b):
    return (a + b - 1) // b * b


def _vmem_limit_bytes():
    """Generation-aware scoped-VMEM limit (leaves headroom for the compiler)."""
    cap = 128 * 1024 * 1024
    try:
        info = pltpu.get_tpu_info()
        cap = int(getattr(info, "vmem_capacity_bytes", cap))
    except Exception:
        pass
    return min(int(cap * 0.85), 110 * 1024 * 1024)


def _pick_tm(n8, tm_req=512):
    """Row-tile size: multiples of 128, and >=2 tiles when rows allow it
    (so v7x's two TensorCores both get work via the 'parallel' rows axis)."""
    if n8 <= 128:
        return min(128, tm_req)
    two_tile = 128 * ((n8 + 255) // 256)     # ~half the rows, multiple of 128
    return max(128, min(tm_req, two_tile))


def _gelu(h, approx):
    if approx:
        # tanh approximation: the tanh runs on the EUP (separate bundle slot),
        # cutting the VALU cost ~4x vs the erf polynomial on v6e/v7x.
        return 0.5 * h * (1.0 + jnp.tanh(_SQRT_2_OVER_PI *
                                         (h + 0.044715 * h * h * h)))
    # Exact erf GELU -- matches PyTorch nn.GELU default numerics.
    return 0.5 * h * (1.0 + lax.erf(h * _INV_SQRT2))


def _layernorm(x_ref, g_ref, bta_ref, *, d, d_pad, out_dtype):
    """f32 LayerNorm over the true D features of a zero-padded (tm, d_pad) tile.

    Two-pass (x - mu)^2 variance (numerically robust); padded feature columns
    are masked out of the statistics and zeroed by the zero-padded gamma.
    """
    x = x_ref[...].astype(jnp.float32)
    inv_d = jnp.float32(1.0 / d)
    mu = jnp.sum(x, axis=-1, keepdims=True) * inv_d       # padded cols are 0
    diff = x - mu
    if d_pad != d:
        col = lax.broadcasted_iota(jnp.int32, x.shape, 1)
        diff_m = jnp.where(col < d, diff, 0.0)
    else:
        diff_m = diff
    var = jnp.sum(diff_m * diff_m, axis=-1, keepdims=True) * inv_d
    xn = diff * lax.rsqrt(var + LN_EPS)
    xn = xn * g_ref[...].astype(jnp.float32) + bta_ref[...].astype(jnp.float32)
    return xn.astype(out_dtype)


# --------------------------------------------------------------------------
# Kernel 1: weight-resident fast path.  Grid = (row tiles,).  W1/W2 have
# constant index maps, so they are DMA'd once and stay resident in VMEM.
# --------------------------------------------------------------------------
def _ffn_resident_kernel(x_ref, g_ref, bta_ref, w1_ref, b1_ref, w2_ref, b2_ref,
                         o_ref, *, d, d_pad, approx_gelu):
    cdt = w1_ref.dtype
    xn = _layernorm(x_ref, g_ref, bta_ref, d=d, d_pad=d_pad, out_dtype=cdt)
    h = jnp.dot(xn, w1_ref[...], preferred_element_type=jnp.float32)
    h = _gelu(h + b1_ref[...].astype(jnp.float32), approx_gelu)
    y = jnp.dot(h.astype(cdt), w2_ref[...], preferred_element_type=jnp.float32)
    o_ref[...] = (y + b2_ref[...].astype(jnp.float32)).astype(o_ref.dtype)


# --------------------------------------------------------------------------
# Kernel 2: streaming path, f32 output: accumulate directly into the resident
# output block (no separate f32 accumulator scratch / final copy pass).
# Grid = (row tiles, hidden chunks); hidden is a reduction axis.
# --------------------------------------------------------------------------
def _ffn_stream_accout_kernel(x_ref, g_ref, bta_ref, w1_ref, b1_ref, w2_ref,
                              b2_ref, o_ref, xn_ref, *, d, d_pad, approx_gelu):
    k = pl.program_id(1)

    @pl.when(k == 0)
    def _():
        xn_ref[...] = _layernorm(x_ref, g_ref, bta_ref, d=d, d_pad=d_pad,
                                 out_dtype=xn_ref.dtype)
        # Seed the resident f32 output block with the output bias once.
        o_ref[...] = jnp.broadcast_to(b2_ref[...].astype(o_ref.dtype),
                                      o_ref.shape)

    h = jnp.dot(xn_ref[...], w1_ref[...], preferred_element_type=jnp.float32)
    h = _gelu(h + b1_ref[...].astype(jnp.float32), approx_gelu)
    o_ref[...] += jnp.dot(h.astype(w2_ref.dtype), w2_ref[...],
                          preferred_element_type=jnp.float32)


# --------------------------------------------------------------------------
# Kernel 3: streaming path, non-f32 output: f32 VMEM accumulator scratch.
# --------------------------------------------------------------------------
def _ffn_stream_scratch_kernel(x_ref, g_ref, bta_ref, w1_ref, b1_ref, w2_ref,
                               b2_ref, o_ref, xn_ref, acc_ref,
                               *, d, d_pad, approx_gelu):
    k = pl.program_id(1)

    @pl.when(k == 0)
    def _():
        xn_ref[...] = _layernorm(x_ref, g_ref, bta_ref, d=d, d_pad=d_pad,
                                 out_dtype=xn_ref.dtype)
        acc_ref[...] = jnp.zeros_like(acc_ref)

    h = jnp.dot(xn_ref[...], w1_ref[...], preferred_element_type=jnp.float32)
    h = _gelu(h + b1_ref[...].astype(jnp.float32), approx_gelu)
    acc_ref[...] += jnp.dot(h.astype(w2_ref.dtype), w2_ref[...],
                            preferred_element_type=jnp.float32)

    @pl.when(k == pl.num_programs(1) - 1)
    def _():
        y = acc_ref[...] + b2_ref[...].astype(jnp.float32)
        o_ref[...] = y.astype(o_ref.dtype)


def feedforward(x, params, *, tm=None, tk=None, compute_dtype=None,
                approx_gelu=False):
    """x: (batch, seq, dim). params: LayerNorm (gamma, beta) + two Linears.

    compute_dtype controls the matmul-operand dtype (LayerNorm stats and all
    accumulation stay f32); defaults to params['w1'].dtype, so bf16 weights or
    compute_dtype=jnp.bfloat16 select the fast bf16-MXU path.  Passing tk
    forces the hidden-dim streaming path (mostly useful for testing).
    """
    B, S, D = x.shape
    H = params["w1"].shape[1]
    N = B * S
    out_dtype = x.dtype

    cdt = (jnp.dtype(compute_dtype) if compute_dtype is not None
           else jnp.dtype(params["w1"].dtype))
    csize = cdt.itemsize
    xsize = jnp.dtype(x.dtype).itemsize
    osize = jnp.dtype(out_dtype).itemsize

    d_pad = _round_up(D, 128)
    h_pad0 = _round_up(H, 128)

    vmem_limit = _vmem_limit_bytes()
    budget = int(vmem_limit * 0.9)        # headroom for compiler temporaries

    n8 = _round_up(N, 8)
    if tm is None:
        tm = _pick_tm(n8)
    else:
        tm = _round_up(min(tm, n8), 8)

    force_stream = tk is not None
    acc_in_out = jnp.dtype(out_dtype) == jnp.float32

    # --- VMEM footprint models (inputs/outputs double-buffered by Pallas) ---
    def resident_bytes(tm_):
        weights = 2 * 2 * d_pad * h_pad0 * csize            # W1 + W2
        io = 2 * tm_ * d_pad * (xsize + osize)               # x tile + out tile
        vecs = 2 * (3 * d_pad + h_pad0) * 4                  # gamma/beta/b1/b2
        temps = tm_ * h_pad0 * 4 + tm_ * d_pad * (4 + csize)  # h, y, xn values
        return weights + io + vecs + temps

    def stream_bytes(tm_, tk_, with_acc):
        wchunks = 2 * 2 * d_pad * tk_ * csize                # W1/W2 k-chunks
        io = 2 * tm_ * d_pad * (xsize + osize)
        xn = tm_ * d_pad * csize                             # cached LN output
        acc = tm_ * d_pad * 4 if with_acc else 0
        vecs = 2 * (3 * d_pad + tk_) * 4
        temps = tm_ * tk_ * (4 + csize)                      # h chunk
        return wchunks + io + xn + acc + vecs + temps

    use_resident = (not force_stream) and resident_bytes(tm) <= budget

    if not use_resident:
        if tk is not None:
            tk = max(128, _round_up(min(tk, h_pad0), 128))
        else:
            tk_sel = None
            for cand in (1024, 512, 256, 128):
                c = min(_round_up(cand, 128), h_pad0)
                if stream_bytes(tm, c, not acc_in_out) <= budget:
                    tk_sel = c
                    break
            if tk_sel is None:
                while tm > 128 and stream_bytes(tm, 128, not acc_in_out) > budget:
                    tm = max(128, tm // 2)
                tk_sel = 128
            tk = tk_sel
        h_pad = _round_up(h_pad0, tk)
    else:
        h_pad = h_pad0

    n_pad = _round_up(N, tm)

    # --- zero-padded operands (padding never perturbs the real outputs) -----
    x2 = jnp.pad(x.reshape(N, D), ((0, n_pad - N), (0, d_pad - D)))
    gamma = jnp.pad(params["gamma"].astype(jnp.float32),
                    (0, d_pad - D)).reshape(1, d_pad)
    beta = jnp.pad(params["beta"].astype(jnp.float32),
                   (0, d_pad - D)).reshape(1, d_pad)
    w1 = jnp.pad(params["w1"].astype(cdt), ((0, d_pad - D), (0, h_pad - H)))
    b1 = jnp.pad(params["b1"].astype(jnp.float32),
                 (0, h_pad - H)).reshape(1, h_pad)
    w2 = jnp.pad(params["w2"].astype(cdt), ((0, h_pad - H), (0, d_pad - D)))
    b2 = jnp.pad(params["b2"].astype(jnp.float32),
                 (0, d_pad - D)).reshape(1, d_pad)

    if use_resident:
        kernel = functools.partial(_ffn_resident_kernel, d=D, d_pad=d_pad,
                                   approx_gelu=approx_gelu)
        out = pl.pallas_call(
            kernel,
            out_shape=jax.ShapeDtypeStruct((n_pad, d_pad), out_dtype),
            grid_spec=pltpu.PrefetchScalarGridSpec(
                num_scalar_prefetch=0,
                grid=(n_pad // tm,),
                in_specs=[
                    pl.BlockSpec((tm, d_pad), lambda i: (i, 0)),     # x rows
                    pl.BlockSpec((1, d_pad), lambda i: (0, 0)),      # gamma
                    pl.BlockSpec((1, d_pad), lambda i: (0, 0)),      # beta
                    pl.BlockSpec((d_pad, h_pad), lambda i: (0, 0)),  # W1 (resident)
                    pl.BlockSpec((1, h_pad), lambda i: (0, 0)),      # b1
                    pl.BlockSpec((h_pad, d_pad), lambda i: (0, 0)),  # W2 (resident)
                    pl.BlockSpec((1, d_pad), lambda i: (0, 0)),      # b2
                ],
                out_specs=pl.BlockSpec((tm, d_pad), lambda i: (i, 0)),
            ),
            compiler_params=pltpu.CompilerParams(
                dimension_semantics=("parallel",),
                vmem_limit_bytes=vmem_limit,
            ),
        )(x2, gamma, beta, w1, b1, w2, b2)
    else:
        grid = (n_pad // tm, h_pad // tk)
        in_specs = [
            pl.BlockSpec((tm, d_pad), lambda i, k: (i, 0)),   # x rows
            pl.BlockSpec((1, d_pad), lambda i, k: (0, 0)),    # gamma
            pl.BlockSpec((1, d_pad), lambda i, k: (0, 0)),    # beta
            pl.BlockSpec((d_pad, tk), lambda i, k: (0, k)),   # W1 col chunk
            pl.BlockSpec((1, tk), lambda i, k: (0, k)),       # b1 chunk
            pl.BlockSpec((tk, d_pad), lambda i, k: (k, 0)),   # W2 row chunk
            pl.BlockSpec((1, d_pad), lambda i, k: (0, 0)),    # b2
        ]
        out_spec = pl.BlockSpec((tm, d_pad), lambda i, k: (i, 0))
        if acc_in_out:
            kernel = functools.partial(_ffn_stream_accout_kernel, d=D,
                                       d_pad=d_pad, approx_gelu=approx_gelu)
            scratch = [pltpu.VMEM((tm, d_pad), cdt)]           # cached LN out
        else:
            kernel = functools.partial(_ffn_stream_scratch_kernel, d=D,
                                       d_pad=d_pad, approx_gelu=approx_gelu)
            scratch = [pltpu.VMEM((tm, d_pad), cdt),           # cached LN out
                       pltpu.VMEM((tm, d_pad), jnp.float32)]   # f32 accumulator
        out = pl.pallas_call(
            kernel,
            out_shape=jax.ShapeDtypeStruct((n_pad, d_pad), out_dtype),
            grid_spec=pltpu.PrefetchScalarGridSpec(
                num_scalar_prefetch=0,
                grid=grid,
                in_specs=in_specs,
                out_specs=out_spec,
                scratch_shapes=scratch,
            ),
            compiler_params=pltpu.CompilerParams(
                dimension_semantics=("parallel", "arbitrary"),
                vmem_limit_bytes=vmem_limit,
            ),
        )(x2, gamma, beta, w1, b1, w2, b2)

    return out[:N, :D].reshape(B, S, D)


def init_params(key, dim, hidden_dim, dtype=jnp.float32):
    k1, k2, k3, k4 = jax.random.split(key, 4)
    # LayerNorm: weight=1, bias=0 (PyTorch default init).
    gamma = jnp.ones((dim,), dtype)
    beta = jnp.zeros((dim,), dtype)
    # Linear: uniform(-1/sqrt(fan_in), 1/sqrt(fan_in)) like PyTorch default.
    lim1 = 1.0 / (dim ** 0.5)
    w1 = jax.random.uniform(k1, (dim, hidden_dim), dtype, -lim1, lim1)
    b1 = jax.random.uniform(k2, (hidden_dim,), dtype, -lim1, lim1)
    lim2 = 1.0 / (hidden_dim ** 0.5)
    w2 = jax.random.uniform(k3, (hidden_dim, dim), dtype, -lim2, lim2)
    b2 = jax.random.uniform(k4, (dim,), dtype, -lim2, lim2)
    return dict(gamma=gamma, beta=beta, w1=w1, b1=b1, w2=w2, b2=b2)


def feedforward_ref(x, p, approximate=False):
    mu = jnp.mean(x, axis=-1, keepdims=True)
    var = jnp.mean((x - mu) ** 2, axis=-1, keepdims=True)
    xn = (x - mu) / jnp.sqrt(var + LN_EPS) * p["gamma"] + p["beta"]
    h = xn @ p["w1"] + p["b1"]
    h = jax.nn.gelu(h, approximate=approximate)
    return h @ p["w2"] + p["b2"]


if __name__ == "__main__":
    key = jax.random.PRNGKey(0)

    # --- test 1: module-sized demo, f32, weight-resident path, exact GELU ---
    batch, seq, dim, hidden_dim = 2, 8, 32, 64
    kx, kp, key = jax.random.split(key, 3)
    x = jax.random.normal(kx, (batch, seq, dim), jnp.float32)
    params = init_params(kp, dim, hidden_dim)
    out = jax.block_until_ready(feedforward(x, params))
    ref = feedforward_ref(x, params)
    assert out.shape == (batch, seq, dim)
    assert jnp.allclose(out, ref, atol=2e-5, rtol=2e-5), "f32 resident mismatch"

    # --- test 2: forced hidden-dim streaming, f32 accumulate-into-output ----
    b2_, s2_, d2_, h2_ = 3, 5, 128, 384
    kx2, kp2, key = jax.random.split(key, 3)
    x2 = jax.random.normal(kx2, (b2_, s2_, d2_), jnp.float32)
    params2 = init_params(kp2, d2_, h2_)
    out2 = jax.block_until_ready(feedforward(x2, params2, tk=128))
    ref2 = feedforward_ref(x2, params2)
    assert jnp.allclose(out2, ref2, atol=2e-5, rtol=2e-5), "stream f32 mismatch"

    # --- test 3: bf16 matmul operands (fast MXU path), resident -------------
    out_bf = jax.block_until_ready(
        feedforward(x, params, compute_dtype=jnp.bfloat16))
    assert jnp.allclose(out_bf, ref, atol=1e-1, rtol=1e-1), "bf16 compute mismatch"

    # --- test 4: bf16 everything, forced streaming -> f32 scratch acc -------
    x_bf = x2.astype(jnp.bfloat16)
    params_bf = {k: v.astype(jnp.bfloat16) for k, v in params2.items()}
    params_bf32 = {k: v.astype(jnp.float32) for k, v in params_bf.items()}
    out4 = jax.block_until_ready(feedforward(x_bf, params_bf, tk=128))
    ref4 = feedforward_ref(x_bf.astype(jnp.float32), params_bf32)
    assert jnp.allclose(out4.astype(jnp.float32), ref4, atol=5e-2, rtol=5e-2), \
        "bf16 stream mismatch"

    # --- test 5: tanh-approx GELU perf option vs approximate reference ------
    out5 = jax.block_until_ready(feedforward(x, params, approx_gelu=True))
    ref5 = feedforward_ref(x, params, approximate=True)
    assert jnp.allclose(out5, ref5, atol=2e-5, rtol=2e-5), "approx gelu mismatch"

    print("KERNEL_OK")
</pallas_src>

<mosaic_0001>
module attributes {stable_mosaic.version = 11 : i64} {
  func.func @_ffn_resident_kernel(%arg0: i32, %arg1: memref<128x128xf32, #tpu.memory_space<vmem>>, %arg2: memref<1x128xf32, #tpu.memory_space<vmem>>, %arg3: memref<1x128xf32, #tpu.memory_space<vmem>>, %arg4: memref<128x128xf32, #tpu.memory_space<vmem>>, %arg5: memref<1x128xf32, #tpu.memory_space<vmem>>, %arg6: memref<128x128xf32, #tpu.memory_space<vmem>>, %arg7: memref<1x128xf32, #tpu.memory_space<vmem>>, %arg8: memref<128x128xf32, #tpu.memory_space<vmem>>) attributes {dimension_semantics = [#tpu.dimension_semantics<parallel>], iteration_bounds = array<i64: 1>, scalar_prefetch = 0 : i64, scratch_operands = 0 : i64, tpu.core_type = #tpu.core_type<tc>, window_params = [{transform_indices = @transform_0, window_bounds = array<i64: 128, 128>}, {pipeline_mode = #tpu.pipeline_mode<synchronous>, transform_indices = @transform_1, window_bounds = array<i64: 1, 128>}, {pipeline_mode = #tpu.pipeline_mode<synchronous>, transform_indices = @transform_2, window_bounds = array<i64: 1, 128>}, {pipeline_mode = #tpu.pipeline_mode<synchronous>, transform_indices = @transform_3, window_bounds = array<i64: 128, 128>}, {pipeline_mode = #tpu.pipeline_mode<synchronous>, transform_indices = @transform_4, window_bounds = array<i64: 1, 128>}, {pipeline_mode = #tpu.pipeline_mode<synchronous>, transform_indices = @transform_5, window_bounds = array<i64: 128, 128>}, {pipeline_mode = #tpu.pipeline_mode<synchronous>, transform_indices = @transform_6, window_bounds = array<i64: 1, 128>}, {transform_indices = @transform_7, window_bounds = array<i64: 128, 128>}]} {
    %c0 = arith.constant 0 : index
    %c0_0 = arith.constant 0 : index
    %0 = vector.load %arg1[%c0, %c0_0] : memref<128x128xf32, #tpu.memory_space<vmem>>, vector<128x128xf32>
    %cst = arith.constant dense<0.000000e+00> : vector<128xf32>
    %1 = vector.multi_reduction <add>, %0, %cst [1] : vector<128x128xf32> to vector<128xf32>
    %2 = vector.shape_cast %1 : vector<128xf32> to vector<128x1xf32>
    %cst_1 = arith.constant 3.125000e-02 : f32
    %3 = vector.broadcast %cst_1 : f32 to vector<128x1xf32>
    %4 = arith.mulf %2, %3 : vector<128x1xf32>
    %5 = vector.broadcast %4 : vector<128x1xf32> to vector<128x128xf32>
    %6 = arith.subf %0, %5 : vector<128x128xf32>
    %7 = tpu.iota {dimensions = array<i32: 1>} : vector<128x128xi32>
    %c32_i32 = arith.constant 32 : i32
    %8 = vector.broadcast %c32_i32 : i32 to vector<128x128xi32>
    %9 = arith.cmpi slt, %7, %8 : vector<128x128xi32>
    %cst_2 = arith.constant 0.000000e+00 : f32
    %10 = vector.broadcast %cst_2 : f32 to vector<128x128xf32>
    %11 = arith.select %9, %6, %10 : vector<128x128xi1>, vector<128x128xf32>
    %12 = arith.mulf %11, %11 : vector<128x128xf32>
    %cst_3 = arith.constant dense<0.000000e+00> : vector<128xf32>
    %13 = vector.multi_reduction <add>, %12, %cst_3 [1] : vector<128x128xf32> to vector<128xf32>
    %14 = vector.shape_cast %13 : vector<128xf32> to vector<128x1xf32>
    %cst_4 = arith.constant 3.125000e-02 : f32
    %15 = vector.broadcast %cst_4 : f32 to vector<128x1xf32>
    %16 = arith.mulf %14, %15 : vector<128x1xf32>
    %cst_5 = arith.constant 9.99999974E-6 : f32
    %17 = vector.broadcast %cst_5 : f32 to vector<128x1xf32>
    %18 = arith.addf %16, %17 : vector<128x1xf32>
    %19 = math.rsqrt %18 : vector<128x1xf32>
    %20 = vector.broadcast %19 : vector<128x1xf32> to vector<128x128xf32>
    %21 = arith.mulf %6, %20 : vector<128x128xf32>
    %c0_6 = arith.constant 0 : index
    %c0_7 = arith.constant 0 : index
    %22 = vector.load %arg2[%c0_6, %c0_7] : memref<1x128xf32, #tpu.memory_space<vmem>>, vector<1x128xf32>
    %23 = vector.broadcast %22 : vector<1x128xf32> to vector<128x128xf32>
    %24 = arith.mulf %21, %23 : vector<128x128xf32>
    %c0_8 = arith.constant 0 : index
    %c0_9 = arith.constant 0 : index
    %25 = vector.load %arg3[%c0_8, %c0_9] : memref<1x128xf32, #tpu.memory_space<vmem>>, vector<1x128xf32>
    %26 = vector.broadcast %25 : vector<1x128xf32> to vector<128x128xf32>
    %27 = arith.addf %24, %26 : vector<128x128xf32>
    %c0_10 = arith.constant 0 : index
    %c0_11 = arith.constant 0 : index
    %28 = vector.load %arg4[%c0_10, %c0_11] : memref<128x128xf32, #tpu.memory_space<vmem>>, vector<128x128xf32>
    %cst_12 = arith.constant dense<0.000000e+00> : vector<128x128xf32>
    %29 = tpu.matmul %27, %28, %cst_12 {dimension_numbers = #tpu.dot_dimension_numbers<[1], [0], [0], [1], [0, 0, 1, 1], [], []>} : vector<128x128xf32>, vector<128x128xf32>, vector<128x128xf32> -> vector<128x128xf32>
    %c0_13 = arith.constant 0 : index
    %c0_14 = arith.constant 0 : index
    %30 = vector.load %arg5[%c0_13, %c0_14] : memref<1x128xf32, #tpu.memory_space<vmem>>, vector<1x128xf32>
    %31 = vector.broadcast %30 : vector<1x128xf32> to vector<128x128xf32>
    %32 = arith.addf %29, %31 : vector<128x128xf32>
    %cst_15 = arith.constant 5.000000e-01 : f32
    %33 = vector.broadcast %cst_15 : f32 to vector<128x128xf32>
    %34 = arith.mulf %33, %32 : vector<128x128xf32>
    %cst_16 = arith.constant 0.707106769 : f32
    %35 = vector.broadcast %cst_16 : f32 to vector<128x128xf32>
    %36 = arith.mulf %32, %35 : vector<128x128xf32>
    %37 = math.erf %36 : vector<128x128xf32>
    %cst_17 = arith.constant 1.000000e+00 : f32
    %38 = vector.broadcast %cst_17 : f32 to vector<128x128xf32>
    %39 = arith.addf %38, %37 : vector<128x128xf32>
    %40 = arith.mulf %34, %39 : vector<128x128xf32>
    %c0_18 = arith.constant 0 : index
    %c0_19 = arith.constant 0 : index
    %41 = vector.load %arg6[%c0_18, %c0_19] : memref<128x128xf32, #tpu.memory_space<vmem>>, vector<128x128xf32>
    %cst_20 = arith.constant dense<0.000000e+00> : vector<128x128xf32>
    %42 = tpu.matmul %40, %41, %cst_20 {dimension_numbers = #tpu.dot_dimension_numbers<[1], [0], [0], [1], [0, 0, 1, 1], [], []>} : vector<128x128xf32>, vector<128x128xf32>, vector<128x128xf32> -> vector<128x128xf32>
    %c0_21 = arith.constant 0 : index
    %c0_22 = arith.constant 0 : index
    %43 = vector.load %arg7[%c0_21, %c0_22] : memref<1x128xf32, #tpu.memory_space<vmem>>, vector<1x128xf32>
    %44 = vector.broadcast %43 : vector<1x128xf32> to vector<128x128xf32>
    %45 = arith.addf %42, %44 : vector<128x128xf32>
    %c0_23 = arith.constant 0 : index
    %c0_24 = arith.constant 0 : index
    %46 = vector.load %arg8[%c0_23, %c0_24] : memref<128x128xf32, #tpu.memory_space<vmem>>, vector<128x128xf32>
    tpu.vector_store %arg8[%c0_23, %c0_24], %45 {strides = array<i32>} : memref<128x128xf32, #tpu.memory_space<vmem>>, vector<128x128xf32>,
    return
  }
  func.func @transform_0(%arg0: i32) -> (i32, i32) {
    %c0_i32 = arith.constant 0 : i32
    %c0_i32_0 = arith.constant 0 : i32
    return %arg0, %c0_i32 : i32, i32
  }
  func.func @transform_1(%arg0: i32) -> (i32, i32) {
    %c0_i32 = arith.constant 0 : i32
    %c0_i32_0 = arith.constant 0 : i32
    %c0_i32_1 = arith.constant 0 : i32
    return %c0_i32, %c0_i32_0 : i32, i32
  }
  func.func @transform_2(%arg0: i32) -> (i32, i32) {
    %c0_i32 = arith.constant 0 : i32
    %c0_i32_0 = arith.constant 0 : i32
    %c0_i32_1 = arith.constant 0 : i32
    return %c0_i32, %c0_i32_0 : i32, i32
  }
  func.func @transform_3(%arg0: i32) -> (i32, i32) {
    %c0_i32 = arith.constant 0 : i32
    %c0_i32_0 = arith.constant 0 : i32
    %c0_i32_1 = arith.constant 0 : i32
    return %c0_i32, %c0_i32_0 : i32, i32
  }
  func.func @transform_4(%arg0: i32) -> (i32, i32) {
    %c0_i32 = arith.constant 0 : i32
    %c0_i32_0 = arith.constant 0 : i32
    %c0_i32_1 = arith.constant 0 : i32
    return %c0_i32, %c0_i32_0 : i32, i32
  }
  func.func @transform_5(%arg0: i32) -> (i32, i32) {
    %c0_i32 = arith.constant 0 : i32
    %c0_i32_0 = arith.constant 0 : i32
    %c0_i32_1 = arith.constant 0 : i32
    return %c0_i32, %c0_i32_0 : i32, i32
  }
  func.func @transform_6(%arg0: i32) -> (i32, i32) {
    %c0_i32 = arith.constant 0 : i32
    %c0_i32_0 = arith.constant 0 : i32
    %c0_i32_1 = arith.constant 0 : i32
    return %c0_i32, %c0_i32_0 : i32, i32
  }
  func.func @transform_7(%arg0: i32) -> (i32, i32) {
    %c0_i32 = arith.constant 0 : i32
    %c0_i32_0 = arith.constant 0 : i32
    return %arg0, %c0_i32 : i32, i32
  }
}

</mosaic_0001>

<llo_original>
// kernel: tpu_custom_call.1
$region0: #{tpu_custom_call.1}
  #allocation0 [shape = 'u32[]', space=smem, size = 0x4, offset = 0x4, fixed_abs, tag = 'smem constant byte address 0x4 - core index']
  #allocation1 [shape = 'u32[144,128]{1,0:T(1,128)}', space=vmem, size = 0x12000, scoped, tag = 'internal scratch']
  %s0 = inlined_call_operand.hbm [shape: f32[128,128], index: 0, kind: input, shape index: {}]
  %s1 = inlined_call_operand.vmem [shape: f32[1,128], index: 1, kind: input, shape index: {}]
  %s2 = inlined_call_operand.vmem [shape: f32[1,128], index: 2, kind: input, shape index: {}]
  %s3 = inlined_call_operand.hbm [shape: f32[128,128], index: 3, kind: input, shape index: {}]
  %s4 = inlined_call_operand.vmem [shape: f32[1,128], index: 4, kind: input, shape index: {}]
  %s5 = inlined_call_operand.hbm [shape: f32[128,128], index: 5, kind: input, shape index: {}]
  %s6 = inlined_call_operand.vmem [shape: f32[1,128], index: 6, kind: input, shape index: {}]
  %s7 = inlined_call_operand.hbm [shape: f32[128,128], index: 7, kind: output, shape index: {}]
  %s8 = sld [smem:[#allocation0]]
  $region50: #{tpu_custom_call.1} parent=0
    _
  %s10 = ssub.s32 1, %s8
  %s11 = scalar_select 0, %s10, %s8
  $region1: #{tpu_custom_call.1} parent=0
    #allocation2 [shape = 'u8[65536]{0}', space=vmem, size = 0x10000, scoped, tag = 'input window, operand 0, single buffered']
    #allocation3 [shape = 's32[1]{0}', space=sflag, size = 0x4, scoped, tag = 'scoped memory for tpu_custom_call.1']
    #allocation4 [shape = 's32[1]{0}', space=sflag, size = 0x4, scoped, tag = 'scoped memory for tpu_custom_call.1']
    #allocation5 [shape = 'u8[65536]{0}', space=vmem, size = 0x10000, scoped, tag = 'input window, operand 3, single buffered']
    #allocation6 [shape = 's32[1]{0}', space=sflag, size = 0x4, scoped, tag = 'scoped memory for tpu_custom_call.1']
    #allocation7 [shape = 'u8[65536]{0}', space=vmem, size = 0x10000, scoped, tag = 'input window, operand 5, single buffered']
    #allocation8 [shape = 'u8[65536]{0}', space=vmem, size = 0x10000, scoped, tag = 'output window, operand 0, single buffered']
    %12 = vsyncpa [#allocation3], 0
    %13 = vsyncpa [#allocation6], 0
    %14 = vsyncpa [#allocation4], 0
    // Predicated region
    $region2: #{tpu_custom_call.1} parent=1 // pred_check
      _
    $region3: #{tpu_custom_call.1} parent=1 // pred_check_branch
      %16 = sbr.rel (0) target = $region5
    $region4: #{tpu_custom_call.1} parent=1 // pred_region
      %s18 = ssub.s32 2048, 2048
      %19 = vsyncadd [#allocation3], %s18
      %s20 = sshll.u32 [#allocation2], 4
      %s21 = int_to_ptr.vmem [resolvable:$true] %s20
      %26 = dma.hbm_to_vmem [thread:$0]  %s0, 2048, %s21, [#allocation3], 128, 128, 8
    $region5: #{tpu_custom_call.1} parent=1 // pred_fallthru
      _
    // Predicated region
    $region6: #{tpu_custom_call.1} parent=1 // pred_check
      _
    $region7: #{tpu_custom_call.1} parent=1 // pred_check_branch
      %28 = sbr.rel (0) target = $region9
    $region8: #{tpu_custom_call.1} parent=1 // pred_region
      _
    $region9: #{tpu_custom_call.1} parent=1 // pred_fallthru
      _
    // Predicated region
    $region10: #{tpu_custom_call.1} parent=1 // pred_check
      _
    $region11: #{tpu_custom_call.1} parent=1 // pred_check_branch
      %30 = sbr.rel (0) target = $region13
    $region12: #{tpu_custom_call.1} parent=1 // pred_region
      _
    $region13: #{tpu_custom_call.1} parent=1 // pred_fallthru
      _
    // Predicated region
    $region14: #{tpu_custom_call.1} parent=1 // pred_check
      _
    $region15: #{tpu_custom_call.1} parent=1 // pred_check_branch
      %32 = sbr.rel (0) target = $region17
    $region16: #{tpu_custom_call.1} parent=1 // pred_region
      %s34 = ssub.s32 2048, 2048
      %35 = vsyncadd [#allocation6], %s34
      %s36 = sshll.u32 [#allocation5], 4
      %s37 = int_to_ptr.vmem [resolvable:$true] %s36
      %42 = dma.hbm_to_vmem [thread:$0]  %s3, 2048, %s37, [#allocation6], 128, 128, 8
    $region17: #{tpu_custom_call.1} parent=1 // pred_fallthru
      _
    // Predicated region
    $region18: #{tpu_custom_call.1} parent=1 // pred_check
      _
    $region19: #{tpu_custom_call.1} parent=1 // pred_check_branch
      %44 = sbr.rel (0) target = $region21
    $region20: #{tpu_custom_call.1} parent=1 // pred_region
      _
    $region21: #{tpu_custom_call.1} parent=1 // pred_fallthru
      _
    // Predicated region
    $region22: #{tpu_custom_call.1} parent=1 // pred_check
      _
    $region23: #{tpu_custom_call.1} parent=1 // pred_check_branch
      %46 = sbr.rel (0) target = $region25
    $region24: #{tpu_custom_call.1} parent=1 // pred_region
      %s48 = ssub.s32 2048, 2048
      %49 = vsyncadd [#allocation6], %s48
      %s50 = sshll.u32 [#allocation7], 4
      %s51 = int_to_ptr.vmem [resolvable:$true] %s50
      %56 = dma.hbm_to_vmem [thread:$0]  %s5, 2048, %s51, [#allocation6], 128, 128, 8
    $region25: #{tpu_custom_call.1} parent=1 // pred_fallthru
      _
    // Predicated region
    $region26: #{tpu_custom_call.1} parent=1 // pred_check
      _
    $region27: #{tpu_custom_call.1} parent=1 // pred_check_branch
      %58 = sbr.rel (0) target = $region29
    $region28: #{tpu_custom_call.1} parent=1 // pred_region
      _
    $region29: #{tpu_custom_call.1} parent=1 // pred_fallthru
      _
    // Predicated region
    $region30: #{tpu_custom_call.1} parent=1 // pred_check
      _
    $region31: #{tpu_custom_call.1} parent=1 // pred_check_branch
      %60 = sbr.rel (0) target = $region33
    $region32: #{tpu_custom_call.1} parent=1 // pred_region
      %61 = dma.done [#allocation3], 2048
    $region33: #{tpu_custom_call.1} parent=1 // pred_fallthru
      _
    // Predicated region
    $region34: #{tpu_custom_call.1} parent=1 // pred_check
      _
    $region35: #{tpu_custom_call.1} parent=1 // pred_check_branch
      %63 = sbr.rel (0) target = $region37
    $region36: #{tpu_custom_call.1} parent=1 // pred_region
      %64 = dma.done [#allocation6], 2048
    $region37: #{tpu_custom_call.1} parent=1 // pred_fallthru
      _
    // Predicated region
    $region38: #{tpu_custom_call.1} parent=1 // pred_check
      _
    $region39: #{tpu_custom_call.1} parent=1 // pred_check_branch
      %66 = sbr.rel (0) target = $region41
    $region40: #{tpu_custom_call.1} parent=1 // pred_region
      %67 = dma.done [#allocation6], 2048
    $region41: #{tpu_custom_call.1} parent=1 // pred_fallthru
      _
    %v68 = vld [vmem:[#allocation2] sm:$0xff]
    %v69 = vld [vmem:[#allocation2 + $0x8] sm:$0xff]
    %v70 = vld [vmem:[#allocation2 + $0x10] sm:$0xff]
    %v71 = vld [vmem:[#allocation2 + $0x18] sm:$0xff]
    %v72 = vld [vmem:[#allocation2 + $0x20] sm:$0xff]
    %v73 = vld [vmem:[#allocation2 + $0x28] sm:$0xff]
    %v74 = vld [vmem:[#allocation2 + $0x30] sm:$0xff]
    %v75 = vld [vmem:[#allocation2 + $0x38] sm:$0xff]
    %v76 = vld [vmem:[#allocation2 + $0x40] sm:$0xff]
    %v77 = vld [vmem:[#allocation2 + $0x48] sm:$0xff]
    %v78 = vld [vmem:[#allocation2 + $0x50] sm:$0xff]
    %v79 = vld [vmem:[#allocation2 + $0x58] sm:$0xff]
    %v80 = vld [vmem:[#allocation2 + $0x60] sm:$0xff]
    %v81 = vld [vmem:[#allocation2 + $0x68] sm:$0xff]
    %v82 = vld [vmem:[#allocation2 + $0x70] sm:$0xff]
    %v83 = vld [vmem:[#allocation2 + $0x78] sm:$0xff]
    %84 = vadd.xlane.f32.xlu0 %v68
    %v85 = vpop.xlane.xlu0 %84
    %86 = vadd.xlane.f32.xlu0 %v69
    %v87 = vpop.xlane.xlu0 %86
    %88 = vadd.xlane.f32.xlu0 %v70
    %v89 = vpop.xlane.xlu0 %88
    %90 = vadd.xlane.f32.xlu0 %v71
    %v91 = vpop.xlane.xlu0 %90
    %92 = vadd.xlane.f32.xlu0 %v72
    %v93 = vpop.xlane.xlu0 %92
    %94 = vadd.xlane.f32.xlu0 %v73
    %v95 = vpop.xlane.xlu0 %94
    %96 = vadd.xlane.f32.xlu0 %v74
    %v97 = vpop.xlane.xlu0 %96
    %98 = vadd.xlane.f32.xlu0 %v75
    %v99 = vpop.xlane.xlu0 %98
    %100 = vadd.xlane.f32.xlu0 %v76
    %v101 = vpop.xlane.xlu0 %100
    %102 = vadd.xlane.f32.xlu0 %v77
    %v103 = vpop.xlane.xlu0 %102
    %104 = vadd.xlane.f32.xlu0 %v78
    %v105 = vpop.xlane.xlu0 %104
    %106 = vadd.xlane.f32.xlu0 %v79
    %v107 = vpop.xlane.xlu0 %106
    %108 = vadd.xlane.f32.xlu0 %v80
    %v109 = vpop.xlane.xlu0 %108
    %110 = vadd.xlane.f32.xlu0 %v81
    %v111 = vpop.xlane.xlu0 %110
    %112 = vadd.xlane.f32.xlu0 %v82
    %v113 = vpop.xlane.xlu0 %112
    %114 = vadd.xlane.f32.xlu0 %v83
    %v115 = vpop.xlane.xlu0 %114
    %v116 = vmul.f32 %v85, 0.03125
    %v117 = vmul.f32 %v87, 0.03125
    %v118 = vmul.f32 %v89, 0.03125
    %v119 = vmul.f32 %v91, 0.03125
    %v120 = vmul.f32 %v93, 0.03125
    %v121 = vmul.f32 %v95, 0.03125
    %v122 = vmul.f32 %v97, 0.03125
    %v123 = vmul.f32 %v99, 0.03125
    %v124 = vmul.f32 %v101, 0.03125
    %v125 = vmul.f32 %v103, 0.03125
    %v126 = vmul.f32 %v105, 0.03125
    %v127 = vmul.f32 %v107, 0.03125
    %v128 = vmul.f32 %v109, 0.03125
    %v129 = vmul.f32 %v111, 0.03125
    %v130 = vmul.f32 %v113, 0.03125
    %v131 = vmul.f32 %v115, 0.03125
    %v132 = vsub.f32 %v68, %v116
    %v133 = vsub.f32 %v69, %v117
    %v134 = vsub.f32 %v70, %v118
    %v135 = vsub.f32 %v71, %v119
    %v136 = vsub.f32 %v72, %v120
    %v137 = vsub.f32 %v73, %v121
    %v138 = vsub.f32 %v74, %v122
    %v139 = vsub.f32 %v75, %v123
    %v140 = vsub.f32 %v76, %v124
    %v141 = vsub.f32 %v77, %v125
    %v142 = vsub.f32 %v78, %v126
    %v143 = vsub.f32 %v79, %v127
    %v144 = vsub.f32 %v80, %v128
    %v145 = vsub.f32 %v81, %v129
    %v146 = vsub.f32 %v82, %v130
    %v147 = vsub.f32 %v83, %v131
    %v148 = vlaneseq
    %v149 = vand.u32 %v148, 127
    %vm150 = vcmp.lt.s32.totalorder %v149, 32
    %v151 = vsel %vm150, %v132, 0.0
    %v152 = vsel %vm150, %v133, 0.0
    %v153 = vsel %vm150, %v134, 0.0
    %v154 = vsel %vm150, %v135, 0.0
    %v155 = vsel %vm150, %v136, 0.0
    %v156 = vsel %vm150, %v137, 0.0
    %v157 = vsel %vm150, %v138, 0.0
    %v158 = vsel %vm150, %v139, 0.0
    %v159 = vsel %vm150, %v140, 0.0
    %v160 = vsel %vm150, %v141, 0.0
    %v161 = vsel %vm150, %v142, 0.0
    %v162 = vsel %vm150, %v143, 0.0
    %v163 = vsel %vm150, %v144, 0.0
    %v164 = vsel %vm150, %v145, 0.0
    %v165 = vsel %vm150, %v146, 0.0
    %v166 = vsel %vm150, %v147, 0.0
    %v167 = vmul.f32 %v151, %v151
    %v168 = vmul.f32 %v152, %v152
    %v169 = vmul.f32 %v153, %v153
    %v170 = vmul.f32 %v154, %v154
    %v171 = vmul.f32 %v155, %v155
    %v172 = vmul.f32 %v156, %v156
    %v173 = vmul.f32 %v157, %v157
    %v174 = vmul.f32 %v158, %v158
    %v175 = vmul.f32 %v159, %v159
    %v176 = vmul.f32 %v160, %v160
    %v177 = vmul.f32 %v161, %v161
    %v178 = vmul.f32 %v162, %v162
    %v179 = vmul.f32 %v163, %v163
    %v180 = vmul.f32 %v164, %v164
    %v181 = vmul.f32 %v165, %v165
    %v182 = vmul.f32 %v166, %v166
    %183 = vadd.xlane.f32.xlu0 %v167
    %v184 = vpop.xlane.xlu0 %183
    %185 = vadd.xlane.f32.xlu0 %v168
    %v186 = vpop.xlane.xlu0 %185
    %187 = vadd.xlane.f32.xlu0 %v169
    %v188 = vpop.xlane.xlu0 %187
    %189 = vadd.xlane.f32.xlu0 %v170
    %v190 = vpop.xlane.xlu0 %189
    %191 = vadd.xlane.f32.xlu0 %v171
    %v192 = vpop.xlane.xlu0 %191
    %193 = vadd.xlane.f32.xlu0 %v172
    %v194 = vpop.xlane.xlu0 %193
    %195 = vadd.xlane.f32.xlu0 %v173
    %v196 = vpop.xlane.xlu0 %195
    %197 = vadd.xlane.f32.xlu0 %v174
    %v198 = vpop.xlane.xlu0 %197
    %199 = vadd.xlane.f32.xlu0 %v175
    %v200 = vpop.xlane.xlu0 %199
    %201 = vadd.xlane.f32.xlu0 %v176
    %v202 = vpop.xlane.xlu0 %201
    %203 = vadd.xlane.f32.xlu0 %v177
    %v204 = vpop.xlane.xlu0 %203
    %205 = vadd.xlane.f32.xlu0 %v178
    %v206 = vpop.xlane.xlu0 %205
    %207 = vadd.xlane.f32.xlu0 %v179
    %v208 = vpop.xlane.xlu0 %207
    %209 = vadd.xlane.f32.xlu0 %v180
    %v210 = vpop.xlane.xlu0 %209
    %211 = vadd.xlane.f32.xlu0 %v181
    %v212 = vpop.xlane.xlu0 %211
    %213 = vadd.xlane.f32.xlu0 %v182
    %v214 = vpop.xlane.xlu0 %213
    %v215 = vmul.f32 %v184, 0.03125
    %v216 = vmul.f32 %v186, 0.03125
    %v217 = vmul.f32 %v188, 0.03125
    %v218 = vmul.f32 %v190, 0.03125
    %v219 = vmul.f32 %v192, 0.03125
    %v220 = vmul.f32 %v194, 0.03125
    %v221 = vmul.f32 %v196, 0.03125
    %v222 = vmul.f32 %v198, 0.03125
    %v223 = vmul.f32 %v200, 0.03125
    %v224 = vmul.f32 %v202, 0.03125
    %v225 = vmul.f32 %v204, 0.03125
    %v226 = vmul.f32 %v206, 0.03125
    %v227 = vmul.f32 %v208, 0.03125
    %v228 = vmul.f32 %v210, 0.03125
    %v229 = vmul.f32 %v212, 0.03125
    %v230 = vmul.f32 %v214, 0.03125
    %v231 = vadd.f32 %v215, 1e-05
    %v232 = vadd.f32 %v216, 1e-05
    %v233 = vadd.f32 %v217, 1e-05
    %v234 = vadd.f32 %v218, 1e-05
    %v235 = vadd.f32 %v219, 1e-05
    %v236 = vadd.f32 %v220, 1e-05
    %v237 = vadd.f32 %v221, 1e-05
    %v238 = vadd.f32 %v222, 1e-05
    %v239 = vadd.f32 %v223, 1e-05
    %v240 = vadd.f32 %v224, 1e-05
    %v241 = vadd.f32 %v225, 1e-05
    %v242 = vadd.f32 %v226, 1e-05
    %v243 = vadd.f32 %v227, 1e-05
    %v244 = vadd.f32 %v228, 1e-05
    %v245 = vadd.f32 %v229, 1e-05
    %v246 = vadd.f32 %v230, 1e-05
    %v247 = vrsqrt.pop %v231
    %v248 = vrsqrt.pop %v232
    %v249 = vrsqrt.pop %v233
    %v250 = vrsqrt.pop %v234
    %v251 = vrsqrt.pop %v235
    %v252 = vrsqrt.pop %v236
    %v253 = vrsqrt.pop %v237
    %v254 = vrsqrt.pop %v238
    %v255 = vrsqrt.pop %v239
    %v256 = vrsqrt.pop %v240
    %v257 = vrsqrt.pop %v241
    %v258 = vrsqrt.pop %v242
    %v259 = vrsqrt.pop %v243
    %v260 = vrsqrt.pop %v244
    %v261 = vrsqrt.pop %v245
    %v262 = vrsqrt.pop %v246
    %v263 = vmul.f32 %v132, %v247
    %v264 = vmul.f32 %v133, %v248
    %v265 = vmul.f32 %v134, %v249
    %v266 = vmul.f32 %v135, %v250
    %v267 = vmul.f32 %v136, %v251
    %v268 = vmul.f32 %v137, %v252
    %v269 = vmul.f32 %v138, %v253
    %v270 = vmul.f32 %v139, %v254
    %v271 = vmul.f32 %v140, %v255
    %v272 = vmul.f32 %v141, %v256
    %v273 = vmul.f32 %v142, %v257
    %v274 = vmul.f32 %v143, %v258
    %v275 = vmul.f32 %v144, %v259
    %v276 = vmul.f32 %v145, %v260
    %v277 = vmul.f32 %v146, %v261
    %v278 = vmul.f32 %v147, %v262
    %v279 = vld [vmem:[%s1] sm:$0x1]
    %v281 = vlaneseq
    %v282 = vshrl.u32 %v281, 7
    %v283 = vsub.s32 0, %v282
    %v284 = vrot.slane %v279, %v283
    %v286 = vmul.f32 %v263, %v284
    %v287 = vmul.f32 %v264, %v284
    %v288 = vmul.f32 %v265, %v284
    %v289 = vmul.f32 %v266, %v284
    %v290 = vmul.f32 %v267, %v284
    %v291 = vmul.f32 %v268, %v284
    %v292 = vmul.f32 %v269, %v284
    %v293 = vmul.f32 %v270, %v284
    %v294 = vmul.f32 %v271, %v284
    %v295 = vmul.f32 %v272, %v284
    %v296 = vmul.f32 %v273, %v284
    %v297 = vmul.f32 %v274, %v284
    %v298 = vmul.f32 %v275, %v284
    %v299 = vmul.f32 %v276, %v284
    %v300 = vmul.f32 %v277, %v284
    %v301 = vmul.f32 %v278, %v284
    %v302 = vld [vmem:[%s2] sm:$0x1]
    %v304 = vlaneseq
    %v305 = vshrl.u32 %v304, 7
    %v306 = vsub.s32 0, %v305
    %v307 = vrot.slane %v302, %v306
    %v309 = vadd.f32 %v286, %v307
    %v310 = vadd.f32 %v287, %v307
    %v311 = vadd.f32 %v288, %v307
    %v312 = vadd.f32 %v289, %v307
    %v313 = vadd.f32 %v290, %v307
    %v314 = vadd.f32 %v291, %v307
    %v315 = vadd.f32 %v292, %v307
    %v316 = vadd.f32 %v293, %v307
    %v317 = vadd.f32 %v294, %v307
    %v318 = vadd.f32 %v295, %v307
    %v319 = vadd.f32 %v296, %v307
    %v320 = vadd.f32 %v297, %v307
    %v321 = vadd.f32 %v298, %v307
    %v322 = vadd.f32 %v299, %v307
    %v323 = vadd.f32 %v300, %v307
    %v324 = vadd.f32 %v301, %v307
    %v325 = vld [vmem:[#allocation5] sm:$0xff]
    %v326 = vld [vmem:[#allocation5 + $0x8] sm:$0xff]
    %v327 = vld [vmem:[#allocation5 + $0x10] sm:$0xff]
    %v328 = vld [vmem:[#allocation5 + $0x18] sm:$0xff]
    %v329 = vld [vmem:[#allocation5 + $0x20] sm:$0xff]
    %v330 = vld [vmem:[#allocation5 + $0x28] sm:$0xff]
    %v331 = vld [vmem:[#allocation5 + $0x30] sm:$0xff]
    %v332 = vld [vmem:[#allocation5 + $0x38] sm:$0xff]
    %v333 = vld [vmem:[#allocation5 + $0x40] sm:$0xff]
    %v334 = vld [vmem:[#allocation5 + $0x48] sm:$0xff]
    %v335 = vld [vmem:[#allocation5 + $0x50] sm:$0xff]
    %v336 = vld [vmem:[#allocation5 + $0x58] sm:$0xff]
    %v337 = vld [vmem:[#allocation5 + $0x60] sm:$0xff]
    %v338 = vld [vmem:[#allocation5 + $0x68] sm:$0xff]
    %v339 = vld [vmem:[#allocation5 + $0x70] sm:$0xff]
    %v340 = vld [vmem:[#allocation5 + $0x78] sm:$0xff]
    %v341 = vld [vmem:[%s4] sm:$0x1]
    %v343 = vlaneseq
    %v344 = vshrl.u32 %v343, 7
    %v345 = vsub.s32 0, %v344
    %v346 = vrot.slane %v341, %v345
    %348 = vmatprep.subr.mxu0 0.0
    %349 = vmatpush1.msra.mxu0 %v340
    %350 = vmatprep.subr.mxu0 0.0
    %351 = vmatpush1.msra.mxu0 %v339
    %352 = vmatprep.subr.mxu0 0.0
    %353 = vmatpush1.msra.mxu0 %v338
    %354 = vmatprep.subr.mxu0 0.0
    %355 = vmatpush1.msra.mxu0 %v337
    %356 = vmatprep.subr.mxu0 0.0
    %357 = vmatpush1.msra.mxu0 %v336
    %358 = vmatprep.subr.mxu0 0.0
    %359 = vmatpush1.msra.mxu0 %v335
    %360 = vmatprep.subr.mxu0 0.0
    %361 = vmatpush1.msra.mxu0 %v334
    %362 = vmatprep.subr.mxu0 0.0
    %363 = vmatpush1.msra.mxu0 %v333
    %364 = vmatprep.subr.mxu0 0.0
    %365 = vmatpush1.msra.mxu0 %v332
    %366 = vmatprep.subr.mxu0 0.0
    %367 = vmatpush1.msra.mxu0 %v331
    %368 = vmatprep.subr.mxu0 0.0
    %369 = vmatpush1.msra.mxu0 %v330
    %370 = vmatprep.subr.mxu0 0.0
    %371 = vmatpush1.msra.mxu0 %v329
    %372 = vmatprep.subr.mxu0 0.0
    %373 = vmatpush1.msra.mxu0 %v328
    %374 = vmatprep.subr.mxu0 0.0
    %375 = vmatpush1.msra.mxu0 %v327
    %376 = vmatprep.subr.mxu0 0.0
    %377 = vmatpush1.msra.mxu0 %v326
    %378 = vmatprep.subr.mxu0 0.0
    %379 = vmatpush1.msra.mxu0 %v325
    %380 = vmatprep.subr.mxu0 0.0
    %381 = vmatpush2.msra.mxu0 0.0
    %382 = vmatprep.subr.mxu0 0.0
    %383 = vmatpush2.msra.mxu0 0.0
    %384 = vmatprep.subr.mxu0 0.0
    %385 = vmatpush2.msra.mxu0 0.0
    %386 = vmatprep.subr.mxu0 0.0
    %387 = vmatpush2.msra.mxu0 0.0
    %388 = vmatprep.subr.mxu0 0.0
    %389 = vmatpush2.msra.mxu0 0.0
    %390 = vmatprep.subr.mxu0 0.0
    %391 = vmatpush2.msra.mxu0 0.0
    %392 = vmatprep.subr.mxu0 0.0
    %393 = vmatpush2.msra.mxu0 0.0
    %394 = vmatprep.subr.mxu0 0.0
    %395 = vmatpush2.msra.mxu0 0.0
    %396 = vmatprep.subr.mxu0 0.0
    %397 = vmatpush2.msra.mxu0 0.0
    %398 = vmatprep.subr.mxu0 0.0
    %399 = vmatpush2.msra.mxu0 0.0
    %400 = vmatprep.subr.mxu0 0.0
    %401 = vmatpush2.msra.mxu0 0.0
    %402 = vmatprep.subr.mxu0 0.0
    %403 = vmatpush2.msra.mxu0 0.0
    %404 = vmatprep.subr.mxu0 0.0
    %405 = vmatpush2.msra.mxu0 0.0
    %406 = vmatprep.subr.mxu0 0.0
    %407 = vmatpush2.msra.mxu0 0.0
    %408 = vmatprep.subr.mxu0 0.0
    %409 = vmatpush2.msra.mxu0 0.0
    %410 = vmatprep.subr.mxu0 0.0
    %411 = vmatpush2.msra.mxu0 0.0
    %412 = vmatprep.mubr.f32.mxu0 0.0
    %413 = vmatmul.mubr.f32.gmra.mxu0 %v309
    %v414 = vpop.f32.mrf.mxu0
    %v415 = vadd.f32 %v346, %v414
    %v416 = vpop.f32.mrf.mxu0
    %417 = vmatprep.mubr.f32.mxu0 0.0
    %418 = vmatmul.mubr.f32.gmra.mxu0 %v310
    %v419 = vpop.f32.mrf.mxu0
    %v420 = vadd.f32 %v346, %v419
    %v421 = vpop.f32.mrf.mxu0
    %422 = vmatprep.mubr.f32.mxu0 0.0
    %423 = vmatmul.mubr.f32.gmra.mxu0 %v311
    %v424 = vpop.f32.mrf.mxu0
    %v425 = vadd.f32 %v346, %v424
    %v426 = vpop.f32.mrf.mxu0
    %427 = vmatprep.mubr.f32.mxu0 0.0
    %428 = vmatmul.mubr.f32.gmra.mxu0 %v312
    %v429 = vpop.f32.mrf.mxu0
    %v430 = vadd.f32 %v346, %v429
    %v431 = vpop.f32.mrf.mxu0
    %432 = vmatprep.mubr.f32.mxu0 0.0
    %433 = vmatmul.mubr.f32.gmra.mxu0 %v313
    %v434 = vpop.f32.mrf.mxu0
    %v435 = vadd.f32 %v346, %v434
    %v436 = vpop.f32.mrf.mxu0
    %437 = vmatprep.mubr.f32.mxu0 0.0
    %438 = vmatmul.mubr.f32.gmra.mxu0 %v314
    %v439 = vpop.f32.mrf.mxu0
    %v440 = vadd.f32 %v346, %v439
    %v441 = vpop.f32.mrf.mxu0
    %442 = vmatprep.mubr.f32.mxu0 0.0
    %443 = vmatmul.mubr.f32.gmra.mxu0 %v315
    %v444 = vpop.f32.mrf.mxu0
    %v445 = vadd.f32 %v346, %v444
    %v446 = vpop.f32.mrf.mxu0
    %447 = vmatprep.mubr.f32.mxu0 0.0
    %448 = vmatmul.mubr.f32.gmra.mxu0 %v316
    %v449 = vpop.f32.mrf.mxu0
    %v450 = vadd.f32 %v346, %v449
    %v451 = vpop.f32.mrf.mxu0
    %452 = vmatprep.mubr.f32.mxu0 0.0
    %453 = vmatmul.mubr.f32.gmra.mxu0 %v317
    %v454 = vpop.f32.mrf.mxu0
    %v455 = vadd.f32 %v346, %v454
    %v456 = vpop.f32.mrf.mxu0
    %457 = vmatprep.mubr.f32.mxu0 0.0
    %458 = vmatmul.mubr.f32.gmra.mxu0 %v318
    %v459 = vpop.f32.mrf.mxu0
    %v460 = vadd.f32 %v346, %v459
    %v461 = vpop.f32.mrf.mxu0
    %462 = vmatprep.mubr.f32.mxu0 0.0
    %463 = vmatmul.mubr.f32.gmra.mxu0 %v319
    %v464 = vpop.f32.mrf.mxu0
    %v465 = vadd.f32 %v346, %v464
    %v466 = vpop.f32.mrf.mxu0
    %467 = vmatprep.mubr.f32.mxu0 0.0
    %468 = vmatmul.mubr.f32.gmra.mxu0 %v320
    %v469 = vpop.f32.mrf.mxu0
    %v470 = vadd.f32 %v346, %v469
    %v471 = vpop.f32.mrf.mxu0
    %472 = vmatprep.mubr.f32.mxu0 0.0
    %473 = vmatmul.mubr.f32.gmra.mxu0 %v321
    %v474 = vpop.f32.mrf.mxu0
    %v475 = vadd.f32 %v346, %v474
    %v476 = vpop.f32.mrf.mxu0
    %477 = vmatprep.mubr.f32.mxu0 0.0
    %478 = vmatmul.mubr.f32.gmra.mxu0 %v322
    %v479 = vpop.f32.mrf.mxu0
    %v480 = vadd.f32 %v346, %v479
    %v481 = vpop.f32.mrf.mxu0
    %482 = vmatprep.mubr.f32.mxu0 0.0
    %483 = vmatmul.mubr.f32.gmra.mxu0 %v323
    %v484 = vpop.f32.mrf.mxu0
    %v485 = vadd.f32 %v346, %v484
    %v486 = vpop.f32.mrf.mxu0
    %487 = vmatprep.mubr.f32.mxu0 0.0
    %488 = vmatmul.mubr.f32.gmra.mxu0 %v324
    %v489 = vpop.f32.mrf.mxu0
    %v490 = vadd.f32 %v346, %v489
    %v491 = vpop.f32.mrf.mxu0
    %492 = vdwg.mxu0
    %v493 = vmul.f32 %v415, 0.5
    %v494 = vmul.f32 %v420, 0.5
    %v495 = vmul.f32 %v425, 0.5
    %v496 = vmul.f32 %v430, 0.5
    %v497 = vmul.f32 %v435, 0.5
    %v498 = vmul.f32 %v440, 0.5
    %v499 = vmul.f32 %v445, 0.5
    %v500 = vmul.f32 %v450, 0.5
    %v501 = vmul.f32 %v455, 0.5
    %v502 = vmul.f32 %v460, 0.5
    %v503 = vmul.f32 %v465, 0.5
    %v504 = vmul.f32 %v470, 0.5
    %v505 = vmul.f32 %v475, 0.5
    %v506 = vmul.f32 %v480, 0.5
    %v507 = vmul.f32 %v485, 0.5
    %v508 = vmul.f32 %v490, 0.5
    %v509 = vmul.f32 %v415, 0.70710677
    %v510 = vmul.f32 %v420, 0.70710677
    %v511 = vmul.f32 %v425, 0.70710677
    %v512 = vmul.f32 %v430, 0.70710677
    %v513 = vmul.f32 %v435, 0.70710677
    %v514 = vmul.f32 %v440, 0.70710677
    %v515 = vmul.f32 %v445, 0.70710677
    %v516 = vmul.f32 %v450, 0.70710677
    %v517 = vmul.f32 %v455, 0.70710677
    %v518 = vmul.f32 %v460, 0.70710677
    %v519 = vmul.f32 %v465, 0.70710677
    %v520 = vmul.f32 %v470, 0.70710677
    %v521 = vmul.f32 %v475, 0.70710677
    %v522 = vmul.f32 %v480, 0.70710677
    %v523 = vmul.f32 %v485, 0.70710677
    %v524 = vmul.f32 %v490, 0.70710677
    %v525 = verf.f32.pop %v509
    %v526 = verf.f32.pop %v510
    %v527 = verf.f32.pop %v511
    %v528 = verf.f32.pop %v512
    %v529 = verf.f32.pop %v513
    %v530 = verf.f32.pop %v514
    %v531 = verf.f32.pop %v515
    %v532 = verf.f32.pop %v516
    %v533 = verf.f32.pop %v517
    %v534 = verf.f32.pop %v518
    %v535 = verf.f32.pop %v519
    %v536 = verf.f32.pop %v520
    %v537 = verf.f32.pop %v521
    %v538 = verf.f32.pop %v522
    %v539 = verf.f32.pop %v523
    %v540 = verf.f32.pop %v524
    %v541 = vadd.f32 %v525, 1.0
    %v542 = vadd.f32 %v526, 1.0
    %v543 = vadd.f32 %v527, 1.0
    %v544 = vadd.f32 %v528, 1.0
    %v545 = vadd.f32 %v529, 1.0
    %v546 = vadd.f32 %v530, 1.0
    %v547 = vadd.f32 %v531, 1.0
    %v548 = vadd.f32 %v532, 1.0
    %v549 = vadd.f32 %v533, 1.0
    %v550 = vadd.f32 %v534, 1.0
    %v551 = vadd.f32 %v535, 1.0
    %v552 = vadd.f32 %v536, 1.0
    %v553 = vadd.f32 %v537, 1.0
    %v554 = vadd.f32 %v538, 1.0
    %v555 = vadd.f32 %v539, 1.0
    %v556 = vadd.f32 %v540, 1.0
    %v557 = vmul.f32 %v493, %v541
    %v558 = vmul.f32 %v494, %v542
    %v559 = vmul.f32 %v495, %v543
    %v560 = vmul.f32 %v496, %v544
    %v561 = vmul.f32 %v497, %v545
    %v562 = vmul.f32 %v498, %v546
    %v563 = vmul.f32 %v499, %v547
    %v564 = vmul.f32 %v500, %v548
    %v565 = vmul.f32 %v501, %v549
    %v566 = vmul.f32 %v502, %v550
    %v567 = vmul.f32 %v503, %v551
    %v568 = vmul.f32 %v504, %v552
    %v569 = vmul.f32 %v505, %v553
    %v570 = vmul.f32 %v506, %v554
    %v571 = vmul.f32 %v507, %v555
    %v572 = vmul.f32 %v508, %v556
    %v573 = vld [vmem:[#allocation7] sm:$0xff]
    %v574 = vld [vmem:[#allocation7 + $0x8] sm:$0xff]
    %v575 = vld [vmem:[#allocation7 + $0x10] sm:$0xff]
    %v576 = vld [vmem:[#allocation7 + $0x18] sm:$0xff]
    %v577 = vld [vmem:[#allocation7 + $0x20] sm:$0xff]
    %v578 = vld [vmem:[#allocation7 + $0x28] sm:$0xff]
    %v579 = vld [vmem:[#allocation7 + $0x30] sm:$0xff]
    %v580 = vld [vmem:[#allocation7 + $0x38] sm:$0xff]
    %v581 = vld [vmem:[#allocation7 + $0x40] sm:$0xff]
    %v582 = vld [vmem:[#allocation7 + $0x48] sm:$0xff]
    %v583 = vld [vmem:[#allocation7 + $0x50] sm:$0xff]
    %v584 = vld [vmem:[#allocation7 + $0x58] sm:$0xff]
    %v585 = vld [vmem:[#allocation7 + $0x60] sm:$0xff]
    %v586 = vld [vmem:[#allocation7 + $0x68] sm:$0xff]
    %v587 = vld [vmem:[#allocation7 + $0x70] sm:$0xff]
    %v588 = vld [vmem:[#allocation7 + $0x78] sm:$0xff]
    %v589 = vld [vmem:[%s6] sm:$0x1]
    %v591 = vlaneseq
    %v592 = vshrl.u32 %v591, 7
    %v593 = vsub.s32 0, %v592
    %v594 = vrot.slane %v589, %v593
    %596 = vmatprep.subr.mxu0 0.0
    %597 = vmatpush1.msra.mxu0 %v588
    %598 = vmatprep.subr.mxu0 0.0
    %599 = vmatpush1.msra.mxu0 %v587
    %600 = vmatprep.subr.mxu0 0.0
    %601 = vmatpush1.msra.mxu0 %v586
    %602 = vmatprep.subr.mxu0 0.0
    %603 = vmatpush1.msra.mxu0 %v585
    %604 = vmatprep.subr.mxu0 0.0
    %605 = vmatpush1.msra.mxu0 %v584
    %606 = vmatprep.subr.mxu0 0.0
    %607 = vmatpush1.msra.mxu0 %v583
    %608 = vmatprep.subr.mxu0 0.0
    %609 = vmatpush1.msra.mxu0 %v582
    %610 = vmatprep.subr.mxu0 0.0
    %611 = vmatpush1.msra.mxu0 %v581
    %612 = vmatprep.subr.mxu0 0.0
    %613 = vmatpush1.msra.mxu0 %v580
    %614 = vmatprep.subr.mxu0 0.0
    %615 = vmatpush1.msra.mxu0 %v579
    %616 = vmatprep.subr.mxu0 0.0
    %617 = vmatpush1.msra.mxu0 %v578
    %618 = vmatprep.subr.mxu0 0.0
    %619 = vmatpush1.msra.mxu0 %v577
    %620 = vmatprep.subr.mxu0 0.0
    %621 = vmatpush1.msra.mxu0 %v576
    %622 = vmatprep.subr.mxu0 0.0
    %623 = vmatpush1.msra.mxu0 %v575
    %624 = vmatprep.subr.mxu0 0.0
    %625 = vmatpush1.msra.mxu0 %v574
    %626 = vmatprep.subr.mxu0 0.0
    %627 = vmatpush1.msra.mxu0 %v573
    %628 = vmatprep.subr.mxu0 0.0
    %629 = vmatpush2.msra.mxu0 0.0
    %630 = vmatprep.subr.mxu0 0.0
    %631 = vmatpush2.msra.mxu0 0.0
    %632 = vmatprep.subr.mxu0 0.0
    %633 = vmatpush2.msra.mxu0 0.0
    %634 = vmatprep.subr.mxu0 0.0
    %635 = vmatpush2.msra.mxu0 0.0
    %636 = vmatprep.subr.mxu0 0.0
    %637 = vmatpush2.msra.mxu0 0.0
    %638 = vmatprep.subr.mxu0 0.0
    %639 = vmatpush2.msra.mxu0 0.0
    %640 = vmatprep.subr.mxu0 0.0
    %641 = vmatpush2.msra.mxu0 0.0
    %642 = vmatprep.subr.mxu0 0.0
    %643 = vmatpush2.msra.mxu0 0.0
    %644 = vmatprep.subr.mxu0 0.0
    %645 = vmatpush2.msra.mxu0 0.0
    %646 = vmatprep.subr.mxu0 0.0
    %647 = vmatpush2.msra.mxu0 0.0
    %648 = vmatprep.subr.mxu0 0.0
    %649 = vmatpush2.msra.mxu0 0.0
    %650 = vmatprep.subr.mxu0 0.0
    %651 = vmatpush2.msra.mxu0 0.0
    %652 = vmatprep.subr.mxu0 0.0
    %653 = vmatpush2.msra.mxu0 0.0
    %654 = vmatprep.subr.mxu0 0.0
    %655 = vmatpush2.msra.mxu0 0.0
    %656 = vmatprep.subr.mxu0 0.0
    %657 = vmatpush2.msra.mxu0 0.0
    %658 = vmatprep.subr.mxu0 0.0
    %659 = vmatpush2.msra.mxu0 0.0
    %660 = vmatprep.mubr.f32.mxu0 0.0
    %661 = vmatmul.mubr.f32.gmra.mxu0 %v557
    %v662 = vpop.f32.mrf.mxu0
    %v663 = vadd.f32 %v594, %v662
    %v664 = vpop.f32.mrf.mxu0
    %665 = vmatprep.mubr.f32.mxu0 0.0
    %666 = vmatmul.mubr.f32.gmra.mxu0 %v558
    %v667 = vpop.f32.mrf.mxu0
    %v668 = vadd.f32 %v594, %v667
    %v669 = vpop.f32.mrf.mxu0
    %670 = vmatprep.mubr.f32.mxu0 0.0
    %671 = vmatmul.mubr.f32.gmra.mxu0 %v559
    %v672 = vpop.f32.mrf.mxu0
    %v673 = vadd.f32 %v594, %v672
    %v674 = vpop.f32.mrf.mxu0
    %675 = vmatprep.mubr.f32.mxu0 0.0
    %676 = vmatmul.mubr.f32.gmra.mxu0 %v560
    %v677 = vpop.f32.mrf.mxu0
    %v678 = vadd.f32 %v594, %v677
    %v679 = vpop.f32.mrf.mxu0
    %680 = vmatprep.mubr.f32.mxu0 0.0
    %681 = vmatmul.mubr.f32.gmra.mxu0 %v561
    %v682 = vpop.f32.mrf.mxu0
    %v683 = vadd.f32 %v594, %v682
    %v684 = vpop.f32.mrf.mxu0
    %685 = vmatprep.mubr.f32.mxu0 0.0
    %686 = vmatmul.mubr.f32.gmra.mxu0 %v562
    %v687 = vpop.f32.mrf.mxu0
    %v688 = vadd.f32 %v594, %v687
    %v689 = vpop.f32.mrf.mxu0
    %690 = vmatprep.mubr.f32.mxu0 0.0
    %691 = vmatmul.mubr.f32.gmra.mxu0 %v563
    %v692 = vpop.f32.mrf.mxu0
    %v693 = vadd.f32 %v594, %v692
    %v694 = vpop.f32.mrf.mxu0
    %695 = vmatprep.mubr.f32.mxu0 0.0
    %696 = vmatmul.mubr.f32.gmra.mxu0 %v564
    %v697 = vpop.f32.mrf.mxu0
    %v698 = vadd.f32 %v594, %v697
    %v699 = vpop.f32.mrf.mxu0
    %700 = vmatprep.mubr.f32.mxu0 0.0
    %701 = vmatmul.mubr.f32.gmra.mxu0 %v565
    %v702 = vpop.f32.mrf.mxu0
    %v703 = vadd.f32 %v594, %v702
    %v704 = vpop.f32.mrf.mxu0
    %705 = vmatprep.mubr.f32.mxu0 0.0
    %706 = vmatmul.mubr.f32.gmra.mxu0 %v566
    %v707 = vpop.f32.mrf.mxu0
    %v708 = vadd.f32 %v594, %v707
    %v709 = vpop.f32.mrf.mxu0
    %710 = vmatprep.mubr.f32.mxu0 0.0
    %711 = vmatmul.mubr.f32.gmra.mxu0 %v567
    %v712 = vpop.f32.mrf.mxu0
    %v713 = vadd.f32 %v594, %v712
    %v714 = vpop.f32.mrf.mxu0
    %715 = vmatprep.mubr.f32.mxu0 0.0
    %716 = vmatmul.mubr.f32.gmra.mxu0 %v568
    %v717 = vpop.f32.mrf.mxu0
    %v718 = vadd.f32 %v594, %v717
    %v719 = vpop.f32.mrf.mxu0
    %720 = vmatprep.mubr.f32.mxu0 0.0
    %721 = vmatmul.mubr.f32.gmra.mxu0 %v569
    %v722 = vpop.f32.mrf.mxu0
    %v723 = vadd.f32 %v594, %v722
    %v724 = vpop.f32.mrf.mxu0
    %725 = vmatprep.mubr.f32.mxu0 0.0
    %726 = vmatmul.mubr.f32.gmra.mxu0 %v570
    %v727 = vpop.f32.mrf.mxu0
    %v728 = vadd.f32 %v594, %v727
    %v729 = vpop.f32.mrf.mxu0
    %730 = vmatprep.mubr.f32.mxu0 0.0
    %731 = vmatmul.mubr.f32.gmra.mxu0 %v571
    %v732 = vpop.f32.mrf.mxu0
    %v733 = vadd.f32 %v594, %v732
    %v734 = vpop.f32.mrf.mxu0
    %735 = vmatprep.mubr.f32.mxu0 0.0
    %736 = vmatmul.mubr.f32.gmra.mxu0 %v572
    %v737 = vpop.f32.mrf.mxu0
    %v738 = vadd.f32 %v594, %v737
    %v739 = vpop.f32.mrf.mxu0
    %740 = vdwg.mxu0
    %741 = vst [vmem:[#allocation8] sm:$0xff] %v663
    %742 = vst [vmem:[#allocation8 + $0x8] sm:$0xff] %v668
    %743 = vst [vmem:[#allocation8 + $0x10] sm:$0xff] %v673
    %744 = vst [vmem:[#allocation8 + $0x18] sm:$0xff] %v678
    %745 = vst [vmem:[#allocation8 + $0x20] sm:$0xff] %v683
    %746 = vst [vmem:[#allocation8 + $0x28] sm:$0xff] %v688
    %747 = vst [vmem:[#allocation8 + $0x30] sm:$0xff] %v693
    %748 = vst [vmem:[#allocation8 + $0x38] sm:$0xff] %v698
    %749 = vst [vmem:[#allocation8 + $0x40] sm:$0xff] %v703
    %750 = vst [vmem:[#allocation8 + $0x48] sm:$0xff] %v708
    %751 = vst [vmem:[#allocation8 + $0x50] sm:$0xff] %v713
    %752 = vst [vmem:[#allocation8 + $0x58] sm:$0xff] %v718
    %753 = vst [vmem:[#allocation8 + $0x60] sm:$0xff] %v723
    %754 = vst [vmem:[#allocation8 + $0x68] sm:$0xff] %v728
    %755 = vst [vmem:[#allocation8 + $0x70] sm:$0xff] %v733
    %756 = vst [vmem:[#allocation8 + $0x78] sm:$0xff] %v738
    // Predicated region
    $region42: #{tpu_custom_call.1} parent=1 // pred_check
      _
    $region43: #{tpu_custom_call.1} parent=1 // pred_check_branch
      %758 = sbr.rel (0) target = $region45
    $region44: #{tpu_custom_call.1} parent=1 // pred_region
      %s760 = ssub.s32 2048, 2048
      %761 = vsyncadd [#allocation4], %s760
      %s762 = sshll.u32 [#allocation8], 4
      %s763 = int_to_ptr.vmem [resolvable:$true] %s762
      %768 = dma.vmem_to_hbm [thread:$0]  %s763, 2048, %s7, [#allocation4], 128, 128, 8
    $region45: #{tpu_custom_call.1} parent=1 // pred_fallthru
      _
    // Predicated region
    $region46: #{tpu_custom_call.1} parent=1 // pred_check
      _
    $region47: #{tpu_custom_call.1} parent=1 // pred_check_branch
      %770 = sbr.rel (0) target = $region49
    $region48: #{tpu_custom_call.1} parent=1 // pred_region
      %771 = dma.done [#allocation4], 2048
    $region49: #{tpu_custom_call.1} parent=1 // pred_fallthru
      _
    %772 = vsyncpa [#allocation3], 1
    %773 = vsyncpa [#allocation6], 1
    %774 = vsyncpa [#allocation4], 1

</llo_original>
